<compile_context>
chip_gen: v7x
topology: tpu7x:2x2x1
jax: 0.10.0
libtpu: 0.0.40
codegen_flags: <defaults>
</compile_context>

<pallas_src>
import math

import jax
import jax.numpy as jnp
import numpy as np
from jax.experimental import pallas as pl
from jax.experimental.pallas import tpu as pltpu


# ----------------------------------------------------------------------------
# Small helpers
# ----------------------------------------------------------------------------
def _pick_nb(batch, rows_list):
    """Images per grid block so every (second-to-minor) row count is 8-aligned.

    Falls back to nb == batch (block == full array, always legal)."""
    for nb in range(1, batch + 1):
        if batch % nb != 0:
            continue
        if all((nb * int(r)) % 8 == 0 for r in rows_list):
            return nb
    return batch


def _mod_const(v, n):
    """v % n for int32 vectors; uses bitwise AND when n is a power of two."""
    n = int(n)
    if n & (n - 1) == 0:
        return v & (n - 1)
    return v % n


def _tile_bytes(shape, dtype):
    shape = tuple(int(s) for s in shape)
    if len(shape) < 2:
        shape = (1,) * (2 - len(shape)) + shape
    lead = 1
    for s in shape[:-2]:
        lead *= s
    sub = -(-shape[-2] // 8) * 8
    lane = -(-shape[-1] // 128) * 128
    return lead * sub * lane * jnp.dtype(dtype).itemsize


def _vmem_limit(blocks, scratch_blocks):
    """Rough scoped-VMEM budget: double-buffered blocks + scratch + headroom."""
    est = sum(_tile_bytes(s, d) for s, d in blocks) * 2
    est += sum(_tile_bytes(s, d) for s, d in scratch_blocks)
    est = 3 * est + (8 << 20)  # headroom for kernel-internal temporaries
    return int(min(max(est, 32 << 20), 56 << 20))  # stay under v7x's 64 MiB


# ----------------------------------------------------------------------------
# pltpu.roll convention probe (cached per dtype).  Fallback is a benign
# zero-fill shift built from static slices (NOT the old select-matrix path).
# ----------------------------------------------------------------------------
_ROLL_MODE_CACHE = {}


def _roll_mode(dtype):
    key = jnp.dtype(dtype).name
    if key in _ROLL_MODE_CACHE:
        return _ROLL_MODE_CACHE[key]
    mode = "shift"
    try:
        def probe(x_ref, o_ref):
            o_ref[...] = pltpu.roll(x_ref[...], shift=1, axis=0)

        n = 16
        x = jnp.tile(jnp.arange(n, dtype=jnp.float32)[:, None], (1, 128))
        x = x.astype(dtype)
        y = np.asarray(pl.pallas_call(
            probe, out_shape=jax.ShapeDtypeStruct((n, 128), dtype))(x))
        col = y[:, 0].astype(np.float32)
        base = np.arange(n, dtype=np.float32)
        if np.array_equal(col, np.roll(base, 1)):
            mode = "pltpu_fwd"      # pltpu.roll(x, k)[m] == x[m - k]  (jnp-like)
        elif np.array_equal(col, np.roll(base, -1)):
            mode = "pltpu_bwd"      # pltpu.roll(x, k)[m] == x[m + k]
    except Exception:
        mode = "shift"
    _ROLL_MODE_CACHE[key] = mode
    return mode


def _shift_rows(v, s, blk, mode):
    """Return vs with vs[m] = v[m + s] (rows that matter; the rest is masked)."""
    if s == 0:
        return v
    if mode == "pltpu_fwd":
        return pltpu.roll(v, shift=(-s) % blk, axis=0)
    if mode == "pltpu_bwd":
        return pltpu.roll(v, shift=s % blk, axis=0)
    zeros = jnp.zeros((abs(s), v.shape[1]), v.dtype)
    if s > 0:
        return jnp.concatenate([v[s:], zeros], axis=0)
    return jnp.concatenate([zeros, v[:s]], axis=0)


# ----------------------------------------------------------------------------
# Fused dense-stage kernel (all layers + transition-or-postnorm epilogue)
# ----------------------------------------------------------------------------
def _make_stage_kernel(num_layers, nb, h, w, cin, growth, inter, cd,
                       roll_mode, mode, ho, wo):
    hw = h * w
    blk = nb * hw
    taps = [(k, k // 3 - 1, k % 3 - 1) for k in range(9)]

    def kernel(*refs):
        it = iter(refs)
        x_ref = next(it)
        layer_refs = [tuple(next(it) for _ in range(4)) for _ in range(num_layers)]
        if mode == "transition":
            wt_ref = next(it)
            st_ref = next(it)
        else:
            pns_ref = next(it)
            pnb_ref = next(it)
        out_ref = next(it)
        pool_ref = next(it) if mode == "transition" else None

        # Row-coordinate helpers for the 3x3 boundary masks (iota + compare;
        # power-of-two sizes use bitwise AND, no vector division needed).
        m_idx = jax.lax.broadcasted_iota(jnp.int32, (blk, 1), 0)
        rem_hw = _mod_const(m_idx, hw)
        x_idx = _mod_const(m_idx, w)

        x = x_ref[...]                                       # (blk, cin) cd
        if mode == "postnorm":
            pns = pns_ref[...]                               # (1, ctot) f32
            pnb = pnb_ref[...]
            out_ref[:, :cin] = (x.astype(jnp.float32) * pns[:, :cin]
                                + pnb[:, :cin]).astype(out_ref.dtype)

        feats = x                                            # growing VMEM value
        for l in range(num_layers):
            w1_ref, s1_ref, w2_ref, s2_ref = layer_refs[l]
            # 1x1 conv + BN + ReLU over the (never HBM-materialized) concat;
            # one matmul with K = cin + l*growth.
            acc1 = jnp.dot(feats, w1_ref[...], preferred_element_type=jnp.float32)
            hmat = jnp.maximum(acc1 + s1_ref[...], 0.0)      # (blk, inter) f32
            # TODO(synk): nn.Dropout(p=0.2) modeled as identity (eval mode).
            h_c = hmat.astype(cd)                            # cast ONCE, roll this

            # 3x3 conv (pad=1): 9 rolled+masked copies -> one K=9*inter matmul.
            cols = []
            for _, dy, dx in taps:
                s = dy * w + dx
                hs = _shift_rows(h_c, s, blk, roll_mode)
                conds = []
                if dy > 0:
                    conds.append(rem_hw < (h - dy) * w)
                elif dy < 0:
                    conds.append(rem_hw >= (-dy) * w)
                if dx > 0:
                    conds.append(x_idx < (w - dx))
                elif dx < 0:
                    conds.append(x_idx >= (-dx))
                if conds:
                    cond = conds[0]
                    for c in conds[1:]:
                        cond = jnp.logical_and(cond, c)
                    hs = jnp.where(cond, hs, jnp.zeros_like(hs))
                cols.append(hs)
            h9 = jnp.concatenate(cols, axis=-1)              # (blk, 9*inter) cd
            acc2 = jnp.dot(h9, w2_ref[...], preferred_element_type=jnp.float32)
            g = jnp.maximum(acc2 + s2_ref[...], 0.0)         # (blk, growth) f32
            # TODO(synk): nn.Dropout(p=0.2) modeled as identity (eval mode).

            if mode == "postnorm":
                c0 = cin + l * growth
                c1 = c0 + growth
                out_ref[:, c0:c1] = (g * pns[:, c0:c1]
                                     + pnb[:, c0:c1]).astype(out_ref.dtype)
            if mode == "transition" or l + 1 < num_layers:
                feats = jnp.concatenate([feats, g.astype(cd)], axis=-1)

        if mode == "transition":
            # Fused transition: 1x1 conv + BN + ReLU + 2x2 avg-pool while the
            # stage features are still VMEM-resident (no HBM round trip).
            acc = jnp.dot(feats, wt_ref[...], preferred_element_type=jnp.float32)
            pool_ref[...] = jnp.maximum(acc + st_ref[...], 0.0)
            howo = ho * wo
            for b in range(nb):
                for yo in range(ho):
                    src = b * hw + (2 * yo) * w
                    dst = b * howo + yo * wo
                    p00 = pool_ref[pl.ds(src, wo, stride=2), :]
                    p01 = pool_ref[pl.ds(src + 1, wo, stride=2), :]
                    p10 = pool_ref[pl.ds(src + w, wo, stride=2), :]
                    p11 = pool_ref[pl.ds(src + w + 1, wo, stride=2), :]
                    out_ref[pl.ds(dst, wo), :] = (
                        0.25 * (p00 + p01 + p10 + p11)).astype(out_ref.dtype)

    return kernel


def dense_stage(x2d, layers, batch, h, w, cd, transition=None, post_norm=None):
    """Run one fused dense stage.  Returns (pooled, ho, wo) for transition
    stages, or the post-normed (M, C_out) f32 slab for the last stage."""
    hw = h * w
    m = batch * hw
    cin = int(x2d.shape[-1])
    num_layers = len(layers)
    growth = int(layers[0]["conv2_w"].shape[-1])
    inter = int(layers[0]["conv1_w"].shape[-1])
    ctot = cin + num_layers * growth
    is_trans = transition is not None
    if is_trans:
        assert h % 2 == 0 and w % 2 == 0  # TODO(synk): ceil_mode for odd sizes
        ho, wo = h // 2, w // 2
        rows_out = ho * wo
    else:
        ho = wo = None
        rows_out = hw
    nb = _pick_nb(batch, (hw, rows_out))
    blk = nb * hw
    grid = (batch // nb,)
    roll_mode = _roll_mode(cd)

    inputs = [x2d.astype(cd)]
    in_specs = [pl.BlockSpec((blk, cin), lambda i: (i, 0))]
    blocks = [((blk, cin), cd)]

    for lp in layers:
        sc1, sh1 = lp["bn1"]
        sc2, sh2 = lp["bn2"]
        w1 = (lp["conv1_w"].reshape(-1, inter) * sc1[None, :]).astype(cd)
        s1 = sh1.reshape(1, inter).astype(jnp.float32)
        w2 = (lp["conv2_w"] * sc2[None, None, None, :]
              ).reshape(9 * inter, growth).astype(cd)
        s2 = sh2.reshape(1, growth).astype(jnp.float32)
        for arr in (w1, s1, w2, s2):
            inputs.append(arr)
            in_specs.append(pl.BlockSpec(arr.shape, lambda i: (0, 0)))
            blocks.append((arr.shape, arr.dtype))

    scratch, scratch_blocks = [], []
    if is_trans:
        sct, sht = transition["bn"]
        wt = (transition["conv_w"].reshape(ctot, -1) * sct[None, :]).astype(cd)
        cout = int(wt.shape[-1])
        st = sht.reshape(1, cout).astype(jnp.float32)
        for arr in (wt, st):
            inputs.append(arr)
            in_specs.append(pl.BlockSpec(arr.shape, lambda i: (0, 0)))
            blocks.append((arr.shape, arr.dtype))
        out_shape = jax.ShapeDtypeStruct((batch * rows_out, cout), cd)
        out_block = (nb * rows_out, cout)
        scratch = [pltpu.VMEM((blk, cout), jnp.float32)]
        scratch_blocks = [((blk, cout), jnp.float32)]
    else:
        ps, pb = post_norm
        pn_s = ps.reshape(1, ctot).astype(jnp.float32)
        pn_b = pb.reshape(1, ctot).astype(jnp.float32)
        for arr in (pn_s, pn_b):
            inputs.append(arr)
            in_specs.append(pl.BlockSpec(arr.shape, lambda i: (0, 0)))
            blocks.append((arr.shape, arr.dtype))
        out_shape = jax.ShapeDtypeStruct((m, ctot), jnp.float32)
        out_block = (blk, ctot)

    out_specs = pl.BlockSpec(out_block, lambda i: (i, 0))
    blocks.append((out_block, out_shape.dtype))
    vlim = _vmem_limit(blocks, scratch_blocks)

    kernel = _make_stage_kernel(num_layers, nb, h, w, cin, growth, inter, cd,
                                roll_mode, "transition" if is_trans else "postnorm",
                                ho, wo)
    out = pl.pallas_call(
        kernel,
        out_shape=out_shape,
        grid=grid,
        in_specs=in_specs,
        out_specs=out_specs,
        scratch_shapes=scratch,
        compiler_params=pltpu.CompilerParams(
            dimension_semantics=("parallel",), vmem_limit_bytes=vlim),
    )(*inputs)
    if is_trans:
        return out, ho, wo
    return out


# ----------------------------------------------------------------------------
# Stem: 7x7/s2 conv (im2col) + BN + ReLU + fused 2x2 max-pool
# ----------------------------------------------------------------------------
def _make_stem_kernel(nb, h1, w1):
    hw1 = h1 * w1
    ho, wo = h1 // 2, w1 // 2
    howo = ho * wo

    def kernel(cols_ref, w_ref, s_ref, o_ref, buf_ref):
        a = jnp.dot(cols_ref[...], w_ref[...], preferred_element_type=jnp.float32)
        buf_ref[...] = jnp.maximum(a + s_ref[...], 0.0)
        for b in range(nb):
            for yo in range(ho):
                src = b * hw1 + (2 * yo) * w1
                dst = b * howo + yo * wo
                p00 = buf_ref[pl.ds(src, wo, stride=2), :]
                p01 = buf_ref[pl.ds(src + 1, wo, stride=2), :]
                p10 = buf_ref[pl.ds(src + w1, wo, stride=2), :]
                p11 = buf_ref[pl.ds(src + w1 + 1, wo, stride=2), :]
                o_ref[pl.ds(dst, wo), :] = jnp.maximum(
                    jnp.maximum(p00, p01), jnp.maximum(p10, p11)).astype(o_ref.dtype)

    return kernel


def im2col(x_nhwc, kh, kw, stride, pad):
    b, h, w, c = x_nhwc.shape
    xp = jnp.pad(x_nhwc, ((0, 0), (pad, pad), (pad, pad), (0, 0)))
    ho = (h + 2 * pad - kh) // stride + 1
    wo = (w + 2 * pad - kw) // stride + 1
    cols = []
    for i in range(kh):
        for j in range(kw):
            cols.append(xp[:, i:i + stride * ho:stride, j:j + stride * wo:stride, :])
    patches = jnp.stack(cols, axis=-2)               # (B, Ho, Wo, kh*kw, C)
    return patches.reshape(b * ho * wo, kh * kw * c), ho, wo


def stem(x_nhwc, conv_w, bn, cd):
    batch = x_nhwc.shape[0]
    c0 = int(conv_w.shape[-1])
    scale, shift = bn
    # TODO(synk): im2col still materializes 49x the (1-channel) input in XLA.
    cols, h1, w1 = im2col(x_nhwc, 7, 7, 2, 3)
    assert h1 % 2 == 0 and w1 % 2 == 0  # TODO(synk): ceil_mode for odd sizes
    kdim = int(cols.shape[-1])
    w0 = (conv_w.reshape(-1, c0) * scale[None, :]).astype(cd)
    s0 = shift.reshape(1, c0).astype(jnp.float32)
    ho, wo = h1 // 2, w1 // 2
    nb = _pick_nb(batch, (h1 * w1, ho * wo))
    blk = nb * h1 * w1
    rows_out = nb * ho * wo
    blocks = [((blk, kdim), cd), (w0.shape, cd), (s0.shape, jnp.float32),
              ((rows_out, c0), cd)]
    vlim = _vmem_limit(blocks, [((blk, c0), jnp.float32)])
    out = pl.pallas_call(
        _make_stem_kernel(nb, h1, w1),
        out_shape=jax.ShapeDtypeStruct((batch * ho * wo, c0), cd),
        grid=(batch // nb,),
        in_specs=[pl.BlockSpec((blk, kdim), lambda i: (i, 0)),
                  pl.BlockSpec((kdim, c0), lambda i: (0, 0)),
                  pl.BlockSpec((1, c0), lambda i: (0, 0))],
        out_specs=pl.BlockSpec((rows_out, c0), lambda i: (i, 0)),
        scratch_shapes=[pltpu.VMEM((blk, c0), jnp.float32)],
        compiler_params=pltpu.CompilerParams(
            dimension_semantics=("parallel",), vmem_limit_bytes=vlim),
    )(cols.astype(cd), w0, s0)
    return out, ho, wo


# ----------------------------------------------------------------------------
# Parameter init (deterministic, synthetic; BN uses running stats)
# ----------------------------------------------------------------------------
def _conv_w(key, kh, kw, cin, cout):
    fan_in = kh * kw * cin
    wgt = jax.random.normal(key, (kh, kw, cin, cout), jnp.float32)
    return wgt * np.sqrt(2.0 / fan_in)


def _bn(key, c, eps=1e-5):
    k1, k2, k3, k4 = jax.random.split(key, 4)
    gamma = 1.0 + 0.1 * jax.random.normal(k1, (c,), jnp.float32)
    beta = 0.1 * jax.random.normal(k2, (c,), jnp.float32)
    mean = 0.1 * jax.random.normal(k3, (c,), jnp.float32)
    var = 1.0 + 0.1 * jnp.abs(jax.random.normal(k4, (c,), jnp.float32))
    scale = gamma / jnp.sqrt(var + eps)
    shift = beta - mean * scale
    return scale, shift


def init_params(key, growth_rate=8, num_layers=2, reduction=0.5):
    keys = iter(jax.random.split(key, 256))
    params = {}
    n_ch = 2 * growth_rate
    params["conv1_w"] = _conv_w(next(keys), 7, 7, 1, n_ch)
    params["norm1"] = _bn(next(keys), n_ch)

    def make_dense(n_ch):
        layers = []
        for _ in range(num_layers):
            inter = 4 * growth_rate
            layers.append(dict(
                conv1_w=_conv_w(next(keys), 1, 1, n_ch, inter),
                bn1=_bn(next(keys), inter),
                conv2_w=_conv_w(next(keys), 3, 3, inter, growth_rate),
                bn2=_bn(next(keys), growth_rate),
            ))
            n_ch += growth_rate
        return layers, n_ch

    params["dense1"], n_ch = make_dense(n_ch)
    n_out = int(math.floor(n_ch * reduction))
    params["trans1"] = dict(conv_w=_conv_w(next(keys), 1, 1, n_ch, n_out),
                            bn=_bn(next(keys), n_out))
    n_ch = n_out
    params["dense2"], n_ch = make_dense(n_ch)
    n_out = int(math.floor(n_ch * reduction))
    params["trans2"] = dict(conv_w=_conv_w(next(keys), 1, 1, n_ch, n_out),
                            bn=_bn(next(keys), n_out))
    n_ch = n_out
    params["dense3"], n_ch = make_dense(n_ch)
    params["post_norm"] = _bn(next(keys), n_ch)
    params["out_channels"] = n_ch
    return params


# ----------------------------------------------------------------------------
# Forward pass built from the Pallas kernels
# ----------------------------------------------------------------------------
def densenet_forward(params, x_nchw, x_mask, compute_dtype=jnp.bfloat16):
    cd = compute_dtype
    x = jnp.transpose(x_nchw, (0, 2, 3, 1)).astype(jnp.float32)   # -> NHWC
    batch = int(x.shape[0])

    h0, hh, ww = stem(x, params["conv1_w"], params["norm1"], cd)
    h1, hh, ww = dense_stage(h0, params["dense1"], batch, hh, ww, cd,
                             transition=params["trans1"])
    h2, hh, ww = dense_stage(h1, params["dense2"], batch, hh, ww, cd,
                             transition=params["trans2"])
    out_mask = x_mask[:, 0::16, 0::16]
    out2d = dense_stage(h2, params["dense3"], batch, hh, ww, cd,
                        post_norm=params["post_norm"])               # (M, C) f32
    c_out = int(out2d.shape[-1])
    out = jnp.transpose(out2d.reshape(batch, hh, ww, c_out), (0, 3, 1, 2))
    return out, out_mask


# ----------------------------------------------------------------------------
# Pure-JAX reference (mirrors the kernel path's cast points for bf16 checks)
# ----------------------------------------------------------------------------
def ref_forward(params, x_nchw, x_mask, compute_dtype=jnp.float32):
    cd = compute_dtype
    x = jnp.transpose(x_nchw, (0, 2, 3, 1)).astype(jnp.float32)

    def conv(h, w, scale, stride=1, pad=0):
        wf = (w * scale[None, None, None, :]).astype(cd)
        return jax.lax.conv_general_dilated(
            h.astype(cd), wf, (stride, stride), ((pad, pad), (pad, pad)),
            dimension_numbers=("NHWC", "HWIO", "NHWC"),
            preferred_element_type=jnp.float32)

    def maxpool(h):
        return jnp.maximum(jnp.maximum(h[:, 0::2, 0::2], h[:, 0::2, 1::2]),
                           jnp.maximum(h[:, 1::2, 0::2], h[:, 1::2, 1::2]))

    def avgpool(h):
        return (h[:, 0::2, 0::2] + h[:, 0::2, 1::2]
                + h[:, 1::2, 0::2] + h[:, 1::2, 1::2]) * 0.25

    def dense(feats, layers):
        gs = []
        for lp in layers:
            s1, b1 = lp["bn1"]
            s2, b2 = lp["bn2"]
            t = jnp.maximum(conv(feats, lp["conv1_w"], s1) + b1, 0.0)
            g = jnp.maximum(conv(t, lp["conv2_w"], s2, pad=1) + b2, 0.0)
            gs.append(g)
            feats = jnp.concatenate([feats, g.astype(cd)], axis=-1)
        return feats, gs

    def trans(feats, tp):
        s, b = tp["bn"]
        r = jnp.maximum(conv(feats, tp["conv_w"], s) + b, 0.0)
        return avgpool(r).astype(cd)

    s0, b0 = params["norm1"]
    h = jnp.maximum(conv(x, params["conv1_w"], s0, stride=2, pad=3) + b0, 0.0)
    h = maxpool(h.astype(cd))
    h, _ = dense(h, params["dense1"])
    h = trans(h, params["trans1"])
    h, _ = dense(h, params["dense2"])
    h = trans(h, params["trans2"])
    out_mask = x_mask[:, 0::16, 0::16]
    h_in3 = h
    _, gs3 = dense(h, params["dense3"])
    post_in = jnp.concatenate([h_in3.astype(jnp.float32)] + gs3, axis=-1)
    ps, pb = params["post_norm"]
    out = post_in * ps + pb
    return jnp.transpose(out, (0, 3, 1, 2)), out_mask


# ----------------------------------------------------------------------------
if __name__ == "__main__":
    key = jax.random.PRNGKey(0)
    kp, kx = jax.random.split(key)
    growth_rate, num_layers = 8, 2
    params = init_params(kp, growth_rate=growth_rate, num_layers=num_layers)

    x = jax.random.normal(kx, (2, 1, 32, 32), jnp.float32)   # NCHW, 1 channel
    x_mask = jnp.ones((2, 32, 32), dtype=jnp.bool_)

    # f32 path: tight correctness check of the fused kernels.
    out32, mask32 = densenet_forward(params, x, x_mask, compute_dtype=jnp.float32)
    out32 = jax.block_until_ready(out32)
    ref32, refm = ref_forward(params, x, x_mask, compute_dtype=jnp.float32)
    np.testing.assert_allclose(np.asarray(out32), np.asarray(ref32),
                               rtol=1e-3, atol=1e-3)
    np.testing.assert_array_equal(np.asarray(mask32), np.asarray(refm))

    # bf16 fast path (bf16 MXU operands, f32 accumulation) vs bf16-mirroring ref.
    out, out_mask = densenet_forward(params, x, x_mask, compute_dtype=jnp.bfloat16)
    out = jax.block_until_ready(out)
    assert out.shape == (2, params["out_channels"], 2, 2), out.shape
    assert out_mask.shape == (2, 2, 2), out_mask.shape
    ref16, _ = ref_forward(params, x, x_mask, compute_dtype=jnp.bfloat16)
    np.testing.assert_allclose(np.asarray(out), np.asarray(ref16),
                               rtol=2e-2, atol=2e-2)

    print("KERNEL_OK")
</pallas_src>

<mosaic_0001>
module attributes {stable_mosaic.version = 11 : i64} {
  func.func @kernel(%arg0: i32, %arg1: memref<256x49xf32, #tpu.memory_space<vmem>>, %arg2: memref<49x16xf32, #tpu.memory_space<vmem>>, %arg3: memref<1x16xf32, #tpu.memory_space<vmem>>, %arg4: memref<64x16xf32, #tpu.memory_space<vmem>>, %arg5: memref<256x16xf32, #tpu.memory_space<vmem>>) attributes {dimension_semantics = [#tpu.dimension_semantics<parallel>], iteration_bounds = array<i64: 2>, scalar_prefetch = 0 : i64, scratch_operands = 1 : i64, tpu.core_type = #tpu.core_type<tc>, window_params = [{transform_indices = @transform_0, window_bounds = array<i64: 256, 49>}, {pipeline_mode = #tpu.pipeline_mode<synchronous>, transform_indices = @transform_1, window_bounds = array<i64: 49, 16>}, {pipeline_mode = #tpu.pipeline_mode<synchronous>, transform_indices = @transform_2, window_bounds = array<i64: 1, 16>}, {transform_indices = @transform_3, window_bounds = array<i64: 64, 16>}]} {
    %c0 = arith.constant 0 : index
    %c0_0 = arith.constant 0 : index
    %0 = vector.load %arg1[%c0, %c0_0] : memref<256x49xf32, #tpu.memory_space<vmem>>, vector<256x49xf32>
    %c0_1 = arith.constant 0 : index
    %c0_2 = arith.constant 0 : index
    %1 = vector.load %arg2[%c0_1, %c0_2] : memref<49x16xf32, #tpu.memory_space<vmem>>, vector<49x16xf32>
    %cst = arith.constant dense<0.000000e+00> : vector<256x16xf32>
    %2 = tpu.matmul %0, %1, %cst {dimension_numbers = #tpu.dot_dimension_numbers<[1], [0], [0], [1], [0, 0, 1, 1], [], []>} : vector<256x49xf32>, vector<49x16xf32>, vector<256x16xf32> -> vector<256x16xf32>
    %c0_3 = arith.constant 0 : index
    %c0_4 = arith.constant 0 : index
    %3 = vector.load %arg3[%c0_3, %c0_4] : memref<1x16xf32, #tpu.memory_space<vmem>>, vector<1x16xf32>
    %4 = vector.broadcast %3 : vector<1x16xf32> to vector<256x16xf32>
    %5 = arith.addf %2, %4 : vector<256x16xf32>
    %cst_5 = arith.constant 0.000000e+00 : f32
    %6 = vector.broadcast %cst_5 : f32 to vector<256x16xf32>
    %7 = arith.maximumf %5, %6 : vector<256x16xf32>
    %c0_6 = arith.constant 0 : index
    %c0_7 = arith.constant 0 : index
    %8 = vector.load %arg5[%c0_6, %c0_7] : memref<256x16xf32, #tpu.memory_space<vmem>>, vector<256x16xf32>
    tpu.vector_store %arg5[%c0_6, %c0_7], %7 {strides = array<i32>} : memref<256x16xf32, #tpu.memory_space<vmem>>, vector<256x16xf32>,
    %c0_8 = arith.constant 0 : index
    %c0_9 = arith.constant 0 : index
    %9 = tpu.strided_load %arg5[%c0_8, %c0_9] {strides = array<i32: 2, 1>} : memref<256x16xf32, #tpu.memory_space<vmem>>, vector<8x16xf32>
    %c1 = arith.constant 1 : index
    %c0_10 = arith.constant 0 : index
    %10 = tpu.strided_load %arg5[%c1, %c0_10] {strides = array<i32: 2, 1>} : memref<256x16xf32, #tpu.memory_space<vmem>>, vector<8x16xf32>
    %c16 = arith.constant 16 : index
    %c0_11 = arith.constant 0 : index
    %11 = tpu.strided_load %arg5[%c16, %c0_11] {strides = array<i32: 2, 1>} : memref<256x16xf32, #tpu.memory_space<vmem>>, vector<8x16xf32>
    %c17 = arith.constant 17 : index
    %c0_12 = arith.constant 0 : index
    %12 = tpu.strided_load %arg5[%c17, %c0_12] {strides = array<i32: 2, 1>} : memref<256x16xf32, #tpu.memory_space<vmem>>, vector<8x16xf32>
    %13 = arith.maximumf %9, %10 : vector<8x16xf32>
    %14 = arith.maximumf %11, %12 : vector<8x16xf32>
    %15 = arith.maximumf %13, %14 : vector<8x16xf32>
    %c0_13 = arith.constant 0 : index
    %c0_14 = arith.constant 0 : index
    %16 = vector.load %arg4[%c0_13, %c0_14] : memref<64x16xf32, #tpu.memory_space<vmem>>, vector<8x16xf32>
    tpu.vector_store %arg4[%c0_13, %c0_14], %15 {strides = array<i32>} : memref<64x16xf32, #tpu.memory_space<vmem>>, vector<8x16xf32>,
    %c32 = arith.constant 32 : index
    %c0_15 = arith.constant 0 : index
    %17 = tpu.strided_load %arg5[%c32, %c0_15] {strides = array<i32: 2, 1>} : memref<256x16xf32, #tpu.memory_space<vmem>>, vector<8x16xf32>
    %c33 = arith.constant 33 : index
    %c0_16 = arith.constant 0 : index
    %18 = tpu.strided_load %arg5[%c33, %c0_16] {strides = array<i32: 2, 1>} : memref<256x16xf32, #tpu.memory_space<vmem>>, vector<8x16xf32>
    %c48 = arith.constant 48 : index
    %c0_17 = arith.constant 0 : index
    %19 = tpu.strided_load %arg5[%c48, %c0_17] {strides = array<i32: 2, 1>} : memref<256x16xf32, #tpu.memory_space<vmem>>, vector<8x16xf32>
    %c49 = arith.constant 49 : index
    %c0_18 = arith.constant 0 : index
    %20 = tpu.strided_load %arg5[%c49, %c0_18] {strides = array<i32: 2, 1>} : memref<256x16xf32, #tpu.memory_space<vmem>>, vector<8x16xf32>
    %21 = arith.maximumf %17, %18 : vector<8x16xf32>
    %22 = arith.maximumf %19, %20 : vector<8x16xf32>
    %23 = arith.maximumf %21, %22 : vector<8x16xf32>
    %c8 = arith.constant 8 : index
    %c0_19 = arith.constant 0 : index
    %24 = vector.load %arg4[%c8, %c0_19] : memref<64x16xf32, #tpu.memory_space<vmem>>, vector<8x16xf32>
    tpu.vector_store %arg4[%c8, %c0_19], %23 {strides = array<i32>} : memref<64x16xf32, #tpu.memory_space<vmem>>, vector<8x16xf32>,
    %c64 = arith.constant 64 : index
    %c0_20 = arith.constant 0 : index
    %25 = tpu.strided_load %arg5[%c64, %c0_20] {strides = array<i32: 2, 1>} : memref<256x16xf32, #tpu.memory_space<vmem>>, vector<8x16xf32>
    %c65 = arith.constant 65 : index
    %c0_21 = arith.constant 0 : index
    %26 = tpu.strided_load %arg5[%c65, %c0_21] {strides = array<i32: 2, 1>} : memref<256x16xf32, #tpu.memory_space<vmem>>, vector<8x16xf32>
    %c80 = arith.constant 80 : index
    %c0_22 = arith.constant 0 : index
    %27 = tpu.strided_load %arg5[%c80, %c0_22] {strides = array<i32: 2, 1>} : memref<256x16xf32, #tpu.memory_space<vmem>>, vector<8x16xf32>
    %c81 = arith.constant 81 : index
    %c0_23 = arith.constant 0 : index
    %28 = tpu.strided_load %arg5[%c81, %c0_23] {strides = array<i32: 2, 1>} : memref<256x16xf32, #tpu.memory_space<vmem>>, vector<8x16xf32>
    %29 = arith.maximumf %25, %26 : vector<8x16xf32>
    %30 = arith.maximumf %27, %28 : vector<8x16xf32>
    %31 = arith.maximumf %29, %30 : vector<8x16xf32>
    %c16_24 = arith.constant 16 : index
    %c0_25 = arith.constant 0 : index
    %32 = vector.load %arg4[%c16_24, %c0_25] : memref<64x16xf32, #tpu.memory_space<vmem>>, vector<8x16xf32>
    tpu.vector_store %arg4[%c16_24, %c0_25], %31 {strides = array<i32>} : memref<64x16xf32, #tpu.memory_space<vmem>>, vector<8x16xf32>,
    %c96 = arith.constant 96 : index
    %c0_26 = arith.constant 0 : index
    %33 = tpu.strided_load %arg5[%c96, %c0_26] {strides = array<i32: 2, 1>} : memref<256x16xf32, #tpu.memory_space<vmem>>, vector<8x16xf32>
    %c97 = arith.constant 97 : index
    %c0_27 = arith.constant 0 : index
    %34 = tpu.strided_load %arg5[%c97, %c0_27] {strides = array<i32: 2, 1>} : memref<256x16xf32, #tpu.memory_space<vmem>>, vector<8x16xf32>
    %c112 = arith.constant 112 : index
    %c0_28 = arith.constant 0 : index
    %35 = tpu.strided_load %arg5[%c112, %c0_28] {strides = array<i32: 2, 1>} : memref<256x16xf32, #tpu.memory_space<vmem>>, vector<8x16xf32>
    %c113 = arith.constant 113 : index
    %c0_29 = arith.constant 0 : index
    %36 = tpu.strided_load %arg5[%c113, %c0_29] {strides = array<i32: 2, 1>} : memref<256x16xf32, #tpu.memory_space<vmem>>, vector<8x16xf32>
    %37 = arith.maximumf %33, %34 : vector<8x16xf32>
    %38 = arith.maximumf %35, %36 : vector<8x16xf32>
    %39 = arith.maximumf %37, %38 : vector<8x16xf32>
    %c24 = arith.constant 24 : index
    %c0_30 = arith.constant 0 : index
    %40 = vector.load %arg4[%c24, %c0_30] : memref<64x16xf32, #tpu.memory_space<vmem>>, vector<8x16xf32>
    tpu.vector_store %arg4[%c24, %c0_30], %39 {strides = array<i32>} : memref<64x16xf32, #tpu.memory_space<vmem>>, vector<8x16xf32>,
    %c128 = arith.constant 128 : index
    %c0_31 = arith.constant 0 : index
    %41 = tpu.strided_load %arg5[%c128, %c0_31] {strides = array<i32: 2, 1>} : memref<256x16xf32, #tpu.memory_space<vmem>>, vector<8x16xf32>
    %c129 = arith.constant 129 : index
    %c0_32 = arith.constant 0 : index
    %42 = tpu.strided_load %arg5[%c129, %c0_32] {strides = array<i32: 2, 1>} : memref<256x16xf32, #tpu.memory_space<vmem>>, vector<8x16xf32>
    %c144 = arith.constant 144 : index
    %c0_33 = arith.constant 0 : index
    %43 = tpu.strided_load %arg5[%c144, %c0_33] {strides = array<i32: 2, 1>} : memref<256x16xf32, #tpu.memory_space<vmem>>, vector<8x16xf32>
    %c145 = arith.constant 145 : index
    %c0_34 = arith.constant 0 : index
    %44 = tpu.strided_load %arg5[%c145, %c0_34] {strides = array<i32: 2, 1>} : memref<256x16xf32, #tpu.memory_space<vmem>>, vector<8x16xf32>
    %45 = arith.maximumf %41, %42 : vector<8x16xf32>
    %46 = arith.maximumf %43, %44 : vector<8x16xf32>
    %47 = arith.maximumf %45, %46 : vector<8x16xf32>
    %c32_35 = arith.constant 32 : index
    %c0_36 = arith.constant 0 : index
    %48 = vector.load %arg4[%c32_35, %c0_36] : memref<64x16xf32, #tpu.memory_space<vmem>>, vector<8x16xf32>
    tpu.vector_store %arg4[%c32_35, %c0_36], %47 {strides = array<i32>} : memref<64x16xf32, #tpu.memory_space<vmem>>, vector<8x16xf32>,
    %c160 = arith.constant 160 : index
    %c0_37 = arith.constant 0 : index
    %49 = tpu.strided_load %arg5[%c160, %c0_37] {strides = array<i32: 2, 1>} : memref<256x16xf32, #tpu.memory_space<vmem>>, vector<8x16xf32>
    %c161 = arith.constant 161 : index
    %c0_38 = arith.constant 0 : index
    %50 = tpu.strided_load %arg5[%c161, %c0_38] {strides = array<i32: 2, 1>} : memref<256x16xf32, #tpu.memory_space<vmem>>, vector<8x16xf32>
    %c176 = arith.constant 176 : index
    %c0_39 = arith.constant 0 : index
    %51 = tpu.strided_load %arg5[%c176, %c0_39] {strides = array<i32: 2, 1>} : memref<256x16xf32, #tpu.memory_space<vmem>>, vector<8x16xf32>
    %c177 = arith.constant 177 : index
    %c0_40 = arith.constant 0 : index
    %52 = tpu.strided_load %arg5[%c177, %c0_40] {strides = array<i32: 2, 1>} : memref<256x16xf32, #tpu.memory_space<vmem>>, vector<8x16xf32>
    %53 = arith.maximumf %49, %50 : vector<8x16xf32>
    %54 = arith.maximumf %51, %52 : vector<8x16xf32>
    %55 = arith.maximumf %53, %54 : vector<8x16xf32>
    %c40 = arith.constant 40 : index
    %c0_41 = arith.constant 0 : index
    %56 = vector.load %arg4[%c40, %c0_41] : memref<64x16xf32, #tpu.memory_space<vmem>>, vector<8x16xf32>
    tpu.vector_store %arg4[%c40, %c0_41], %55 {strides = array<i32>} : memref<64x16xf32, #tpu.memory_space<vmem>>, vector<8x16xf32>,
    %c192 = arith.constant 192 : index
    %c0_42 = arith.constant 0 : index
    %57 = tpu.strided_load %arg5[%c192, %c0_42] {strides = array<i32: 2, 1>} : memref<256x16xf32, #tpu.memory_space<vmem>>, vector<8x16xf32>
    %c193 = arith.constant 193 : index
    %c0_43 = arith.constant 0 : index
    %58 = tpu.strided_load %arg5[%c193, %c0_43] {strides = array<i32: 2, 1>} : memref<256x16xf32, #tpu.memory_space<vmem>>, vector<8x16xf32>
    %c208 = arith.constant 208 : index
    %c0_44 = arith.constant 0 : index
    %59 = tpu.strided_load %arg5[%c208, %c0_44] {strides = array<i32: 2, 1>} : memref<256x16xf32, #tpu.memory_space<vmem>>, vector<8x16xf32>
    %c209 = arith.constant 209 : index
    %c0_45 = arith.constant 0 : index
    %60 = tpu.strided_load %arg5[%c209, %c0_45] {strides = array<i32: 2, 1>} : memref<256x16xf32, #tpu.memory_space<vmem>>, vector<8x16xf32>
    %61 = arith.maximumf %57, %58 : vector<8x16xf32>
    %62 = arith.maximumf %59, %60 : vector<8x16xf32>
    %63 = arith.maximumf %61, %62 : vector<8x16xf32>
    %c48_46 = arith.constant 48 : index
    %c0_47 = arith.constant 0 : index
    %64 = vector.load %arg4[%c48_46, %c0_47] : memref<64x16xf32, #tpu.memory_space<vmem>>, vector<8x16xf32>
    tpu.vector_store %arg4[%c48_46, %c0_47], %63 {strides = array<i32>} : memref<64x16xf32, #tpu.memory_space<vmem>>, vector<8x16xf32>,
    %c224 = arith.constant 224 : index
    %c0_48 = arith.constant 0 : index
    %65 = tpu.strided_load %arg5[%c224, %c0_48] {strides = array<i32: 2, 1>} : memref<256x16xf32, #tpu.memory_space<vmem>>, vector<8x16xf32>
    %c225 = arith.constant 225 : index
    %c0_49 = arith.constant 0 : index
    %66 = tpu.strided_load %arg5[%c225, %c0_49] {strides = array<i32: 2, 1>} : memref<256x16xf32, #tpu.memory_space<vmem>>, vector<8x16xf32>
    %c240 = arith.constant 240 : index
    %c0_50 = arith.constant 0 : index
    %67 = tpu.strided_load %arg5[%c240, %c0_50] {strides = array<i32: 2, 1>} : memref<256x16xf32, #tpu.memory_space<vmem>>, vector<8x16xf32>
    %c241 = arith.constant 241 : index
    %c0_51 = arith.constant 0 : index
    %68 = tpu.strided_load %arg5[%c241, %c0_51] {strides = array<i32: 2, 1>} : memref<256x16xf32, #tpu.memory_space<vmem>>, vector<8x16xf32>
    %69 = arith.maximumf %65, %66 : vector<8x16xf32>
    %70 = arith.maximumf %67, %68 : vector<8x16xf32>
    %71 = arith.maximumf %69, %70 : vector<8x16xf32>
    %c56 = arith.constant 56 : index
    %c0_52 = arith.constant 0 : index
    %72 = vector.load %arg4[%c56, %c0_52] : memref<64x16xf32, #tpu.memory_space<vmem>>, vector<8x16xf32>
    tpu.vector_store %arg4[%c56, %c0_52], %71 {strides = array<i32>} : memref<64x16xf32, #tpu.memory_space<vmem>>, vector<8x16xf32>,
    return
  }
  func.func @transform_0(%arg0: i32) -> (i32, i32) {
    %c0_i32 = arith.constant 0 : i32
    %c0_i32_0 = arith.constant 0 : i32
    return %arg0, %c0_i32 : i32, i32
  }
  func.func @transform_1(%arg0: i32) -> (i32, i32) {
    %c0_i32 = arith.constant 0 : i32
    %c0_i32_0 = arith.constant 0 : i32
    %c0_i32_1 = arith.constant 0 : i32
    return %c0_i32, %c0_i32_0 : i32, i32
  }
  func.func @transform_2(%arg0: i32) -> (i32, i32) {
    %c0_i32 = arith.constant 0 : i32
    %c0_i32_0 = arith.constant 0 : i32
    %c0_i32_1 = arith.constant 0 : i32
    return %c0_i32, %c0_i32_0 : i32, i32
  }
  func.func @transform_3(%arg0: i32) -> (i32, i32) {
    %c0_i32 = arith.constant 0 : i32
    %c0_i32_0 = arith.constant 0 : i32
    return %arg0, %c0_i32 : i32, i32
  }
}

</mosaic_0001>

<llo_original>
// kernel: tpu_custom_call.1
$region0: #{tpu_custom_call.1}
  #allocation0 [shape = 'u32[]', space=smem, size = 0x4, offset = 0x4, fixed_abs, tag = 'smem constant byte address 0x4 - core index']
  #allocation1 [shape = 'u32[144,128]{1,0:T(1,128)}', space=vmem, size = 0x12000, scoped, tag = 'internal scratch']
  #allocation2 [shape = 'f32[256,16]{1,0:T(8,128)}', space=vmem, size = 0x20000, scoped, tag = 'scratch operand']
  %s0 = inlined_call_operand.vmem [shape: f32[512,49], index: 0, kind: input, shape index: {}]
  %s1 = inlined_call_operand.vmem [shape: f32[49,16], index: 1, kind: input, shape index: {}]
  %s2 = inlined_call_operand.vmem [shape: f32[1,16], index: 2, kind: input, shape index: {}]
  %s3 = inlined_call_operand.vmem [shape: f32[128,16], index: 3, kind: output, shape index: {}]
  %s4 = sld [smem:[#allocation0]]
  $region45: #{tpu_custom_call.1} parent=0
    _
  %s6 = ssub.s32 1, %s4
  %s7 = scalar_select 0, %s6, %s4
  loop: start=0, step=1, limit=4
  $region2: #{tpu_custom_call.1} parent=0 // loop_pre_header
    _
  $region3: #{tpu_custom_call.1} parent=0 // loop_header
    %s9 = sphi 0, %s13
    %p10 = scmp.ge.s32.totalorder %s9, 4
    %s19 = sphi 0, %s21
    %s22 = sphi 0, %s19
    %s23 = sphi 0, %s22
    %s39 = sphi 0, %s23
    %s43 = sphi 0, %s43
    %s45 = sphi 0, %s43
    %s46 = sphi 0, %s45
    %s60 = sphi 0, %s46
    %s64 = sphi 0, %s64
    %s66 = sphi 0, %s64
    %s67 = sphi 0, %s66
    %s81 = sphi 0, %s67
    %s87 = sphi 0, %s89
    %s90 = sphi 0, %s87
    %s91 = sphi 0, %s90
    %s107 = sphi 0, %s91
  $region4: #{tpu_custom_call.1} parent=0 // loop_header_branch
    %12 = sbr.rel (%p10) target = $region8
  $region5: #{tpu_custom_call.1} parent=0 // loop_body
    %s14 = ssub.s32 %s9, 1
    %s15 = ssub.s32 %s9, 2
    %s16 = sadd.s32 %s9, 1
    %s17 = ssub.s32 %s9, %s16
    %p18 = scmp.eq.s32.totalorder %s17, 0
    %s20 = sadd.s32 %s19, 1
    %s21 = scalar_select %p18, %s19, %s20
    %p24 = pneg %p18
    %p25 = scmp.eq.s32.totalorder %s9, 1
    %p26 = por %p24, %p25
    %p27 = scmp.ne.s32.totalorder %s19, %s22
    %p28 = scmp.eq.s32.totalorder %s9, 0
    %p29 = por %p27, %p28
    %p30 = scmp.ne.s32.totalorder %s19, %s22
    %p31 = scmp.eq.s32.totalorder %s14, 1
    %p32 = por %p30, %p31
    %p33 = scmp.ne.s32.totalorder %s22, %s23
    %p34 = scmp.eq.s32.totalorder %s14, 0
    %p35 = por %p33, %p34
    %p36 = scmp.ne.s32.totalorder %s22, %s23
    %p37 = scmp.eq.s32.totalorder %s15, 1
    %p38 = por %p36, %p37
    %p40 = scmp.ne.s32.totalorder %s23, %s39
    %p41 = scmp.eq.s32.totalorder %s15, 0
    %p42 = por %p40, %p41
    %s44 = sadd.s32 %s43, 1
    %p47 = scmp.eq.s32.totalorder %s9, 1
    %p48 = scmp.ne.s32.totalorder %s43, %s45
    %p49 = scmp.eq.s32.totalorder %s9, 0
    %p50 = por %p48, %p49
    %p51 = scmp.ne.s32.totalorder %s43, %s45
    %p52 = scmp.eq.s32.totalorder %s14, 1
    %p53 = por %p51, %p52
    %p54 = scmp.ne.s32.totalorder %s45, %s46
    %p55 = scmp.eq.s32.totalorder %s14, 0
    %p56 = por %p54, %p55
    %p57 = scmp.ne.s32.totalorder %s45, %s46
    %p58 = scmp.eq.s32.totalorder %s15, 1
    %p59 = por %p57, %p58
    %p61 = scmp.ne.s32.totalorder %s46, %s60
    %p62 = scmp.eq.s32.totalorder %s15, 0
    %p63 = por %p61, %p62
    %s65 = sadd.s32 %s64, 1
    %p68 = scmp.eq.s32.totalorder %s9, 1
    %p69 = scmp.ne.s32.totalorder %s64, %s66
    %p70 = scmp.eq.s32.totalorder %s9, 0
    %p71 = por %p69, %p70
    %p72 = scmp.ne.s32.totalorder %s64, %s66
    %p73 = scmp.eq.s32.totalorder %s14, 1
    %p74 = por %p72, %p73
    %p75 = scmp.ne.s32.totalorder %s66, %s67
    %p76 = scmp.eq.s32.totalorder %s14, 0
    %p77 = por %p75, %p76
    %p78 = scmp.ne.s32.totalorder %s66, %s67
    %p79 = scmp.eq.s32.totalorder %s15, 1
    %p80 = por %p78, %p79
    %p82 = scmp.ne.s32.totalorder %s67, %s81
    %p83 = scmp.eq.s32.totalorder %s15, 0
    %p84 = por %p82, %p83
    %s85 = ssub.s32 %s9, %s16
    %p86 = scmp.eq.s32.totalorder %s85, 0
    %s88 = sadd.s32 %s87, 1
    %s89 = scalar_select %p86, %s87, %s88
    %p92 = pneg %p86
    %p93 = scmp.eq.s32.totalorder %s9, 1
    %p94 = por %p92, %p93
    %p95 = scmp.ne.s32.totalorder %s87, %s90
    %p96 = scmp.eq.s32.totalorder %s9, 0
    %p97 = por %p95, %p96
    %p98 = scmp.ne.s32.totalorder %s87, %s90
    %p99 = scmp.eq.s32.totalorder %s14, 1
    %p100 = por %p98, %p99
    %p101 = scmp.ne.s32.totalorder %s90, %s91
    %p102 = scmp.eq.s32.totalorder %s14, 0
    %p103 = por %p101, %p102
    %p104 = scmp.ne.s32.totalorder %s90, %s91
    %p105 = scmp.eq.s32.totalorder %s15, 1
    %p106 = por %p104, %p105
    %p108 = scmp.ne.s32.totalorder %s91, %s107
    %p109 = scmp.eq.s32.totalorder %s15, 0
    %p110 = por %p108, %p109
    %p111 = scmp.le.s32.totalorder 1, %s9
    %p112 = scmp.lt.s32.totalorder %s9, 3
    %p113 = pnand %p111, %p112
    %p114 = pneg %p113
    // Predicated region
    $region9: #{tpu_custom_call.1} parent=5 // pred_check
      _
    $region10: #{tpu_custom_call.1} parent=5 // pred_check_branch
      %116 = sbr.rel (%p113) target = $region12
    $region11: #{tpu_custom_call.1} parent=5 // pred_region
      %s117 = ssub.s32 %s9, 1
      // Predicated region
      $region13: #{tpu_custom_call.1} parent=11 // pred_check
        %p118 = pneg %p56
      $region14: #{tpu_custom_call.1} parent=11 // pred_check_branch
        %120 = sbr.rel (%p118) target = $region16
      $region15: #{tpu_custom_call.1} parent=11 // pred_region
        _
      $region16: #{tpu_custom_call.1} parent=11 // pred_fallthru
        _
      // Predicated region
      $region17: #{tpu_custom_call.1} parent=11 // pred_check
        %p121 = pneg %p77
      $region18: #{tpu_custom_call.1} parent=11 // pred_check_branch
        %123 = sbr.rel (%p121) target = $region20
      $region19: #{tpu_custom_call.1} parent=11 // pred_region
        _
      $region20: #{tpu_custom_call.1} parent=11 // pred_fallthru
        _
    $region12: #{tpu_custom_call.1} parent=5 // pred_fallthru
      _
    %p124 = scmp.lt.s32.totalorder %s9, 2
    // Predicated region
    $region21: #{tpu_custom_call.1} parent=5 // pred_check
      %p125 = pneg %p124
    $region22: #{tpu_custom_call.1} parent=5 // pred_check_branch
      %127 = sbr.rel (%p125) target = $region24
    $region23: #{tpu_custom_call.1} parent=5 // pred_region
      // Predicated region
      $region25: #{tpu_custom_call.1} parent=23 // pred_check
        %p128 = pneg %p29
      $region26: #{tpu_custom_call.1} parent=23 // pred_check_branch
        %130 = sbr.rel (%p128) target = $region28
      $region27: #{tpu_custom_call.1} parent=23 // pred_region
        %s131 = smul.u32 32, %s9
        %p132 = scmp.lt.s32.totalorder %s131, 63
        %s133 = scalar_select %p132, %s131, 63
        %s134 = smul.addr %s133, 8
        %s135 = scalar_lea.vmem %s0, %s134
        %s136 = smul.u32 32, %s9
      $region28: #{tpu_custom_call.1} parent=23 // pred_fallthru
        _
    $region24: #{tpu_custom_call.1} parent=5 // pred_fallthru
      _
    %p137 = scmp.le.s32.totalorder 1, %s9
    %p138 = scmp.lt.s32.totalorder %s9, 3
    %p139 = pnand %p137, %p138
    %p140 = pneg %p139
    // Predicated region
    $region29: #{tpu_custom_call.1} parent=5 // pred_check
      _
    $region30: #{tpu_custom_call.1} parent=5 // pred_check_branch
      %142 = sbr.rel (%p139) target = $region32
    $region31: #{tpu_custom_call.1} parent=5 // pred_region
      %s143 = ssub.s32 %s9, 1
      %s144 = smul.u32 32, %s14
      %p145 = scmp.lt.s32.totalorder %s144, 63
      %s146 = scalar_select %p145, %s144, 63
      %s147 = smul.addr %s146, 8
      %s148 = scalar_lea.vmem %s0, %s147
      %p149 = pneg %p35
      %p150 = pneg %p32
      %p151 = pneg %p56
      %p152 = pneg %p53
      %p153 = pneg %p77
      %p154 = pneg %p74
      %p155 = pneg %p103
      %p156 = pneg %p100
      %s157 = smul.u32 8, %s14
      %p158 = scmp.lt.s32.totalorder %s157, 15
      %s159 = scalar_select %p158, %s157, 15
      %s160 = smul.addr %s159, 8
      %s161 = scalar_lea.vmem %s3, %s160
      %s162 = smul.u32 32, %s14
      %p163 = scmp.lt.s32.totalorder %s162, 63
      %s164 = scalar_select %p163, %s162, 63
      %s165 = smul.addr %s164, 8
      %s166 = scalar_lea.vmem %s0, %s165
      %s167 = smul.u32 32, %s14
      %s168 = smul.u32 8, %s14
      %p169 = scmp.lt.s32.totalorder %s168, 15
      %s170 = scalar_select %p169, %s168, 15
      %s171 = smul.addr %s170, 8
      %s172 = scalar_lea.vmem %s3, %s171
      %s173 = smul.u32 8, %s14
      %v174 = vld [vmem:[%s166] sm:$0xff]
      %v175 = vld [vmem:[%s166 + $0x8] sm:$0xff]
      %v176 = vld [vmem:[%s166 + $0x10] sm:$0xff]
      %v177 = vld [vmem:[%s166 + $0x18] sm:$0xff]
      %v178 = vld [vmem:[%s166 + $0x20] sm:$0xff]
      %v179 = vld [vmem:[%s166 + $0x28] sm:$0xff]
      %v180 = vld [vmem:[%s166 + $0x30] sm:$0xff]
      %v181 = vld [vmem:[%s166 + $0x38] sm:$0xff]
      %v182 = vld [vmem:[%s166 + $0x40] sm:$0xff]
      %v183 = vld [vmem:[%s166 + $0x48] sm:$0xff]
      %v184 = vld [vmem:[%s166 + $0x50] sm:$0xff]
      %v185 = vld [vmem:[%s166 + $0x58] sm:$0xff]
      %v186 = vld [vmem:[%s166 + $0x60] sm:$0xff]
      %v187 = vld [vmem:[%s166 + $0x68] sm:$0xff]
      %v188 = vld [vmem:[%s166 + $0x70] sm:$0xff]
      %v189 = vld [vmem:[%s166 + $0x78] sm:$0xff]
      %v190 = vld [vmem:[%s166 + $0x80] sm:$0xff]
      %v191 = vld [vmem:[%s166 + $0x88] sm:$0xff]
      %v192 = vld [vmem:[%s166 + $0x90] sm:$0xff]
      %v193 = vld [vmem:[%s166 + $0x98] sm:$0xff]
      %v194 = vld [vmem:[%s166 + $0xa0] sm:$0xff]
      %v195 = vld [vmem:[%s166 + $0xa8] sm:$0xff]
      %v196 = vld [vmem:[%s166 + $0xb0] sm:$0xff]
      %v197 = vld [vmem:[%s166 + $0xb8] sm:$0xff]
      %v198 = vld [vmem:[%s166 + $0xc0] sm:$0xff]
      %v199 = vld [vmem:[%s166 + $0xc8] sm:$0xff]
      %v200 = vld [vmem:[%s166 + $0xd0] sm:$0xff]
      %v201 = vld [vmem:[%s166 + $0xd8] sm:$0xff]
      %v202 = vld [vmem:[%s166 + $0xe0] sm:$0xff]
      %v203 = vld [vmem:[%s166 + $0xe8] sm:$0xff]
      %v204 = vld [vmem:[%s166 + $0xf0] sm:$0xff]
      %v205 = vld [vmem:[%s166 + $0xf8] sm:$0xff]
      %v206 = vld [vmem:[%s1] sm:$0xff]
      %v207 = vld [vmem:[%s1 + $0x8] sm:$0xff]
      %v208 = vld [vmem:[%s1 + $0x10] sm:$0xff]
      %v209 = vld [vmem:[%s1 + $0x18] sm:$0xff]
      %v210 = vld [vmem:[%s1 + $0x20] sm:$0xff]
      %v211 = vld [vmem:[%s1 + $0x28] sm:$0xff]
      %v212 = vld [vmem:[%s1 + $0x30] sm:$0x1]
      %v213 = vld [vmem:[%s2] sm:$0x1]
      %v215 = vlaneseq
      %v216 = vshrl.u32 %v215, 7
      %v217 = vsub.s32 0, %v216
      %v218 = vrot.slane %v213, %v217
      %vm220 = vcmask 400384
      %v222 = vsel %vm220, %v174, 0
      %v225 = vsel %vm220, %v175, 0
      %v228 = vsel %vm220, %v176, 0
      %v231 = vsel %vm220, %v177, 0
      %v234 = vsel %vm220, %v178, 0
      %v237 = vsel %vm220, %v179, 0
      %v240 = vsel %vm220, %v180, 0
      %v243 = vsel %vm220, %v181, 0
      %v246 = vsel %vm220, %v182, 0
      %v249 = vsel %vm220, %v183, 0
      %v252 = vsel %vm220, %v184, 0
      %v255 = vsel %vm220, %v185, 0
      %v258 = vsel %vm220, %v186, 0
      %v261 = vsel %vm220, %v187, 0
      %v264 = vsel %vm220, %v188, 0
      %v267 = vsel %vm220, %v189, 0
      %v270 = vsel %vm220, %v190, 0
      %v273 = vsel %vm220, %v191, 0
      %v276 = vsel %vm220, %v192, 0
      %v279 = vsel %vm220, %v193, 0
      %v282 = vsel %vm220, %v194, 0
      %v285 = vsel %vm220, %v195, 0
      %v288 = vsel %vm220, %v196, 0
      %v291 = vsel %vm220, %v197, 0
      %v294 = vsel %vm220, %v198, 0
      %v297 = vsel %vm220, %v199, 0
      %v300 = vsel %vm220, %v200, 0
      %v303 = vsel %vm220, %v201, 0
      %v306 = vsel %vm220, %v202, 0
      %v309 = vsel %vm220, %v203, 0
      %v312 = vsel %vm220, %v204, 0
      %v315 = vsel %vm220, %v205, 0
      %vm317 = vcmask 1040384
      %v319 = vsel %vm317, %v212, 0
      %321 = vmatprep.subr.mxu0 0.0
      %322 = vmatpush1.msra.mxu0 %v206
      %323 = vmatprep.subr.mxu0 0.0
      %324 = vmatpush1.msra.mxu0 %v207
      %325 = vmatprep.subr.mxu0 0.0
      %326 = vmatpush1.msra.mxu0 %v208
      %327 = vmatprep.subr.mxu0 0.0
      %328 = vmatpush1.msra.mxu0 %v209
      %329 = vmatprep.subr.mxu0 0.0
      %330 = vmatpush1.msra.mxu0 %v210
      %331 = vmatprep.subr.mxu0 0.0
      %332 = vmatpush1.msra.mxu0 %v211
      %333 = vmatprep.subr.mxu0 0.0
      %334 = vmatpush1.msra.mxu0 %v319
      %335 = vmatprep.subr.mxu0 0.0
      %336 = vmatpush1.msra.mxu0 0.0
      %337 = vmatprep.subr.mxu0 0.0
      %338 = vmatpush1.msra.mxu0 0.0
      %339 = vmatprep.subr.mxu0 0.0
      %340 = vmatpush1.msra.mxu0 0.0
      %341 = vmatprep.subr.mxu0 0.0
      %342 = vmatpush1.msra.mxu0 0.0
      %343 = vmatprep.subr.mxu0 0.0
      %344 = vmatpush1.msra.mxu0 0.0
      %345 = vmatprep.subr.mxu0 0.0
      %346 = vmatpush1.msra.mxu0 0.0
      %347 = vmatprep.subr.mxu0 0.0
      %348 = vmatpush1.msra.mxu0 0.0
      %349 = vmatprep.subr.mxu0 0.0
      %350 = vmatpush1.msra.mxu0 0.0
      %351 = vmatprep.subr.mxu0 0.0
      %352 = vmatpush1.msra.mxu0 0.0
      %353 = vmatprep.subr.mxu0 0.0
      %354 = vmatpush1.msra.mxu0 0.0
      %355 = vmatprep.subr.mxu0 0.0
      %356 = vmatpush1.msra.mxu0 0.0
      %357 = vmatprep.subr.mxu0 0.0
      %358 = vmatpush1.msra.mxu0 0.0
      %359 = vmatprep.subr.mxu0 0.0
      %360 = vmatpush1.msra.mxu0 0.0
      %361 = vmatprep.subr.mxu0 0.0
      %362 = vmatpush1.msra.mxu0 0.0
      %363 = vmatprep.subr.mxu0 0.0
      %364 = vmatpush1.msra.mxu0 0.0
      %365 = vmatprep.subr.mxu0 0.0
      %366 = vmatpush1.msra.mxu0 0.0
      %367 = vmatprep.subr.mxu0 0.0
      %368 = vmatpush1.msra.mxu0 0.0
      %369 = vmatprep.subr.mxu0 0.0
      %370 = vmatpush1.msra.mxu0 0.0
      %371 = vmatprep.subr.mxu0 0.0
      %372 = vmatpush1.msra.mxu0 0.0
      %373 = vmatprep.subr.mxu0 0.0
      %374 = vmatpush1.msra.mxu0 0.0
      %375 = vmatprep.subr.mxu0 0.0
      %376 = vmatpush1.msra.mxu0 0.0
      %377 = vmatprep.subr.mxu0 0.0
      %378 = vmatpush1.msra.mxu0 0.0
      %379 = vmatprep.subr.mxu0 0.0
      %380 = vmatpush1.msra.mxu0 0.0
      %381 = vmatprep.subr.mxu0 0.0
      %382 = vmatpush1.msra.mxu0 0.0
      %383 = vmatprep.subr.mxu0 0.0
      %384 = vmatpush1.msra.mxu0 0.0
      %385 = vmatprep.mubr.f32.mxu0 0.0
      %386 = vmatmul.mubr.f32.gmra.mrb[0].mxu0 %v222
      %v387 = vpop.f32.mrb[0].mxu0
      %v388 = vadd.f32 %v218, %v387
      %v389 = vpop.f32.mrb[0].mxu0
      %390 = vmatprep.mubr.f32.mxu0 0.0
      %391 = vmatmul.mubr.f32.gmra.mrb[0].mxu0 %v225
      %v392 = vpop.f32.mrb[0].mxu0
      %v393 = vadd.f32 %v218, %v392
      %v394 = vpop.f32.mrb[0].mxu0
      %395 = vmatprep.mubr.f32.mxu0 0.0
      %396 = vmatmul.mubr.f32.gmra.mrb[0].mxu0 %v228
      %v397 = vpop.f32.mrb[0].mxu0
      %v398 = vadd.f32 %v218, %v397
      %v399 = vpop.f32.mrb[0].mxu0
      %400 = vmatprep.mubr.f32.mxu0 0.0
      %401 = vmatmul.mubr.f32.gmra.mrb[0].mxu0 %v231
      %v402 = vpop.f32.mrb[0].mxu0
      %v403 = vadd.f32 %v218, %v402
      %v404 = vpop.f32.mrb[0].mxu0
      %405 = vmatprep.mubr.f32.mxu0 0.0
      %406 = vmatmul.mubr.f32.gmra.mrb[0].mxu0 %v234
      %v407 = vpop.f32.mrb[0].mxu0
      %v408 = vadd.f32 %v218, %v407
      %v409 = vpop.f32.mrb[0].mxu0
      %410 = vmatprep.mubr.f32.mxu0 0.0
      %411 = vmatmul.mubr.f32.gmra.mrb[0].mxu0 %v237
      %v412 = vpop.f32.mrb[0].mxu0
      %v413 = vadd.f32 %v218, %v412
      %v414 = vpop.f32.mrb[0].mxu0
      %415 = vmatprep.mubr.f32.mxu0 0.0
      %416 = vmatmul.mubr.f32.gmra.mrb[0].mxu0 %v240
      %v417 = vpop.f32.mrb[0].mxu0
      %v418 = vadd.f32 %v218, %v417
      %v419 = vpop.f32.mrb[0].mxu0
      %420 = vmatprep.mubr.f32.mxu0 0.0
      %421 = vmatmul.mubr.f32.gmra.mrb[0].mxu0 %v243
      %v422 = vpop.f32.mrb[0].mxu0
      %v423 = vadd.f32 %v218, %v422
      %v424 = vpop.f32.mrb[0].mxu0
      %425 = vmatprep.mubr.f32.mxu0 0.0
      %426 = vmatmul.mubr.f32.gmra.mrb[0].mxu0 %v246
      %v427 = vpop.f32.mrb[0].mxu0
      %v428 = vadd.f32 %v218, %v427
      %v429 = vpop.f32.mrb[0].mxu0
      %430 = vmatprep.mubr.f32.mxu0 0.0
      %431 = vmatmul.mubr.f32.gmra.mrb[0].mxu0 %v249
      %v432 = vpop.f32.mrb[0].mxu0
      %v433 = vadd.f32 %v218, %v432
      %v434 = vpop.f32.mrb[0].mxu0
      %435 = vmatprep.mubr.f32.mxu0 0.0
      %436 = vmatmul.mubr.f32.gmra.mrb[0].mxu0 %v252
      %v437 = vpop.f32.mrb[0].mxu0
      %v438 = vadd.f32 %v218, %v437
      %v439 = vpop.f32.mrb[0].mxu0
      %440 = vmatprep.mubr.f32.mxu0 0.0
      %441 = vmatmul.mubr.f32.gmra.mrb[0].mxu0 %v255
      %v442 = vpop.f32.mrb[0].mxu0
      %v443 = vadd.f32 %v218, %v442
      %v444 = vpop.f32.mrb[0].mxu0
      %445 = vmatprep.mubr.f32.mxu0 0.0
      %446 = vmatmul.mubr.f32.gmra.mrb[0].mxu0 %v258
      %v447 = vpop.f32.mrb[0].mxu0
      %v448 = vadd.f32 %v218, %v447
      %v449 = vpop.f32.mrb[0].mxu0
      %450 = vmatprep.mubr.f32.mxu0 0.0
      %451 = vmatmul.mubr.f32.gmra.mrb[0].mxu0 %v261
      %v452 = vpop.f32.mrb[0].mxu0
      %v453 = vadd.f32 %v218, %v452
      %v454 = vpop.f32.mrb[0].mxu0
      %455 = vmatprep.mubr.f32.mxu0 0.0
      %456 = vmatmul.mubr.f32.gmra.mrb[0].mxu0 %v264
      %v457 = vpop.f32.mrb[0].mxu0
      %v458 = vadd.f32 %v218, %v457
      %v459 = vpop.f32.mrb[0].mxu0
      %460 = vmatprep.mubr.f32.mxu0 0.0
      %461 = vmatmul.mubr.f32.gmra.mrb[0].mxu0 %v267
      %v462 = vpop.f32.mrb[0].mxu0
      %v463 = vadd.f32 %v218, %v462
      %v464 = vpop.f32.mrb[0].mxu0
      %465 = vmatprep.mubr.f32.mxu0 0.0
      %466 = vmatmul.mubr.f32.gmra.mrb[0].mxu0 %v270
      %v467 = vpop.f32.mrb[0].mxu0
      %v468 = vadd.f32 %v218, %v467
      %v469 = vpop.f32.mrb[0].mxu0
      %470 = vmatprep.mubr.f32.mxu0 0.0
      %471 = vmatmul.mubr.f32.gmra.mrb[0].mxu0 %v273
      %v472 = vpop.f32.mrb[0].mxu0
      %v473 = vadd.f32 %v218, %v472
      %v474 = vpop.f32.mrb[0].mxu0
      %475 = vmatprep.mubr.f32.mxu0 0.0
      %476 = vmatmul.mubr.f32.gmra.mrb[0].mxu0 %v276
      %v477 = vpop.f32.mrb[0].mxu0
      %v478 = vadd.f32 %v218, %v477
      %v479 = vpop.f32.mrb[0].mxu0
      %480 = vmatprep.mubr.f32.mxu0 0.0
      %481 = vmatmul.mubr.f32.gmra.mrb[0].mxu0 %v279
      %v482 = vpop.f32.mrb[0].mxu0
      %v483 = vadd.f32 %v218, %v482
      %v484 = vpop.f32.mrb[0].mxu0
      %485 = vmatprep.mubr.f32.mxu0 0.0
      %486 = vmatmul.mubr.f32.gmra.mrb[0].mxu0 %v282
      %v487 = vpop.f32.mrb[0].mxu0
      %v488 = vadd.f32 %v218, %v487
      %v489 = vpop.f32.mrb[0].mxu0
      %490 = vmatprep.mubr.f32.mxu0 0.0
      %491 = vmatmul.mubr.f32.gmra.mrb[0].mxu0 %v285
      %v492 = vpop.f32.mrb[0].mxu0
      %v493 = vadd.f32 %v218, %v492
      %v494 = vpop.f32.mrb[0].mxu0
      %495 = vmatprep.mubr.f32.mxu0 0.0
      %496 = vmatmul.mubr.f32.gmra.mrb[0].mxu0 %v288
      %v497 = vpop.f32.mrb[0].mxu0
      %v498 = vadd.f32 %v218, %v497
      %v499 = vpop.f32.mrb[0].mxu0
      %500 = vmatprep.mubr.f32.mxu0 0.0
      %501 = vmatmul.mubr.f32.gmra.mrb[0].mxu0 %v291
      %v502 = vpop.f32.mrb[0].mxu0
      %v503 = vadd.f32 %v218, %v502
      %v504 = vpop.f32.mrb[0].mxu0
      %505 = vmatprep.mubr.f32.mxu0 0.0
      %506 = vmatmul.mubr.f32.gmra.mrb[0].mxu0 %v294
      %v507 = vpop.f32.mrb[0].mxu0
      %v508 = vadd.f32 %v218, %v507
      %v509 = vpop.f32.mrb[0].mxu0
      %510 = vmatprep.mubr.f32.mxu0 0.0
      %511 = vmatmul.mubr.f32.gmra.mrb[0].mxu0 %v297
      %v512 = vpop.f32.mrb[0].mxu0
      %v513 = vadd.f32 %v218, %v512
      %v514 = vpop.f32.mrb[0].mxu0
      %515 = vmatprep.mubr.f32.mxu0 0.0
      %516 = vmatmul.mubr.f32.gmra.mrb[0].mxu0 %v300
      %v517 = vpop.f32.mrb[0].mxu0
      %v518 = vadd.f32 %v218, %v517
      %v519 = vpop.f32.mrb[0].mxu0
      %520 = vmatprep.mubr.f32.mxu0 0.0
      %521 = vmatmul.mubr.f32.gmra.mrb[0].mxu0 %v303
      %v522 = vpop.f32.mrb[0].mxu0
      %v523 = vadd.f32 %v218, %v522
      %v524 = vpop.f32.mrb[0].mxu0
      %525 = vmatprep.mubr.f32.mxu0 0.0
      %526 = vmatmul.mubr.f32.gmra.mrb[0].mxu0 %v306
      %v527 = vpop.f32.mrb[0].mxu0
      %v528 = vadd.f32 %v218, %v527
      %v529 = vpop.f32.mrb[0].mxu0
      %530 = vmatprep.mubr.f32.mxu0 0.0
      %531 = vmatmul.mubr.f32.gmra.mrb[0].mxu0 %v309
      %v532 = vpop.f32.mrb[0].mxu0
      %v533 = vadd.f32 %v218, %v532
      %v534 = vpop.f32.mrb[0].mxu0
      %535 = vmatprep.mubr.f32.mxu0 0.0
      %536 = vmatmul.mubr.f32.gmra.mrb[0].mxu0 %v312
      %v537 = vpop.f32.mrb[0].mxu0
      %v538 = vadd.f32 %v218, %v537
      %v539 = vpop.f32.mrb[0].mxu0
      %540 = vmatprep.mubr.f32.mxu0 0.0
      %541 = vmatmul.mubr.f32.gmra.mrb[0].mxu0 %v315
      %v542 = vpop.f32.mrb[0].mxu0
      %v543 = vadd.f32 %v218, %v542
      %v544 = vpop.f32.mrb[0].mxu0
      %545 = vdwg.mxu0
      %v546 = vmax.f32 %v388, 0.0
      %v547 = vmax.f32 %v393, 0.0
      %v548 = vmax.f32 %v398, 0.0
      %v549 = vmax.f32 %v403, 0.0
      %v550 = vmax.f32 %v408, 0.0
      %v551 = vmax.f32 %v413, 0.0
      %v552 = vmax.f32 %v418, 0.0
      %v553 = vmax.f32 %v423, 0.0
      %v554 = vmax.f32 %v428, 0.0
      %v555 = vmax.f32 %v433, 0.0
      %v556 = vmax.f32 %v438, 0.0
      %v557 = vmax.f32 %v443, 0.0
      %v558 = vmax.f32 %v448, 0.0
      %v559 = vmax.f32 %v453, 0.0
      %v560 = vmax.f32 %v458, 0.0
      %v561 = vmax.f32 %v463, 0.0
      %v562 = vmax.f32 %v468, 0.0
      %v563 = vmax.f32 %v473, 0.0
      %v564 = vmax.f32 %v478, 0.0
      %v565 = vmax.f32 %v483, 0.0
      %v566 = vmax.f32 %v488, 0.0
      %v567 = vmax.f32 %v493, 0.0
      %v568 = vmax.f32 %v498, 0.0
      %v569 = vmax.f32 %v503, 0.0
      %v570 = vmax.f32 %v508, 0.0
      %v571 = vmax.f32 %v513, 0.0
      %v572 = vmax.f32 %v518, 0.0
      %v573 = vmax.f32 %v523, 0.0
      %v574 = vmax.f32 %v528, 0.0
      %v575 = vmax.f32 %v533, 0.0
      %v576 = vmax.f32 %v538, 0.0
      %v577 = vmax.f32 %v543, 0.0
      %vm578 = vcmask 130048
      %579 = vst.msk [vmem:[#allocation2] sm:$0xff] %vm578, %v546
      %580 = vst.msk [vmem:[#allocation2 + $0x8] sm:$0xff] %vm578, %v547
      %581 = vst.msk [vmem:[#allocation2 + $0x10] sm:$0xff] %vm578, %v548
      %582 = vst.msk [vmem:[#allocation2 + $0x18] sm:$0xff] %vm578, %v549
      %583 = vst.msk [vmem:[#allocation2 + $0x20] sm:$0xff] %vm578, %v550
      %584 = vst.msk [vmem:[#allocation2 + $0x28] sm:$0xff] %vm578, %v551
      %585 = vst.msk [vmem:[#allocation2 + $0x30] sm:$0xff] %vm578, %v552
      %586 = vst.msk [vmem:[#allocation2 + $0x38] sm:$0xff] %vm578, %v553
      %587 = vst.msk [vmem:[#allocation2 + $0x40] sm:$0xff] %vm578, %v554
      %588 = vst.msk [vmem:[#allocation2 + $0x48] sm:$0xff] %vm578, %v555
      %589 = vst.msk [vmem:[#allocation2 + $0x50] sm:$0xff] %vm578, %v556
      %590 = vst.msk [vmem:[#allocation2 + $0x58] sm:$0xff] %vm578, %v557
      %591 = vst.msk [vmem:[#allocation2 + $0x60] sm:$0xff] %vm578, %v558
      %592 = vst.msk [vmem:[#allocation2 + $0x68] sm:$0xff] %vm578, %v559
      %593 = vst.msk [vmem:[#allocation2 + $0x70] sm:$0xff] %vm578, %v560
      %594 = vst.msk [vmem:[#allocation2 + $0x78] sm:$0xff] %vm578, %v561
      %595 = vst.msk [vmem:[#allocation2 + $0x80] sm:$0xff] %vm578, %v562
      %596 = vst.msk [vmem:[#allocation2 + $0x88] sm:$0xff] %vm578, %v563
      %597 = vst.msk [vmem:[#allocation2 + $0x90] sm:$0xff] %vm578, %v564
      %598 = vst.msk [vmem:[#allocation2 + $0x98] sm:$0xff] %vm578, %v565
      %599 = vst.msk [vmem:[#allocation2 + $0xa0] sm:$0xff] %vm578, %v566
      %600 = vst.msk [vmem:[#allocation2 + $0xa8] sm:$0xff] %vm578, %v567
      %601 = vst.msk [vmem:[#allocation2 + $0xb0] sm:$0xff] %vm578, %v568
      %602 = vst.msk [vmem:[#allocation2 + $0xb8] sm:$0xff] %vm578, %v569
      %603 = vst.msk [vmem:[#allocation2 + $0xc0] sm:$0xff] %vm578, %v570
      %604 = vst.msk [vmem:[#allocation2 + $0xc8] sm:$0xff] %vm578, %v571
      %605 = vst.msk [vmem:[#allocation2 + $0xd0] sm:$0xff] %vm578, %v572
      %606 = vst.msk [vmem:[#allocation2 + $0xd8] sm:$0xff] %vm578, %v573
      %607 = vst.msk [vmem:[#allocation2 + $0xe0] sm:$0xff] %vm578, %v574
      %608 = vst.msk [vmem:[#allocation2 + $0xe8] sm:$0xff] %vm578, %v575
      %609 = vst.msk [vmem:[#allocation2 + $0xf0] sm:$0xff] %vm578, %v576
      %610 = vst.msk [vmem:[#allocation2 + $0xf8] sm:$0xff] %vm578, %v577
      %v611 = vld [vmem:[#allocation2] ss:$2 sm:$0xff]
      %s612 = scalar_lea.vmem [#allocation2], 1
      %v613 = vld [vmem:[%s612] ss:$2 sm:$0xff]
      %s614 = scalar_lea.vmem [#allocation2], 16
      %v615 = vld [vmem:[%s614] ss:$2 sm:$0xff]
      %s616 = scalar_lea.vmem [#allocation2], 17
      %v617 = vld [vmem:[%s616] ss:$2 sm:$0xff]
      %v618 = vmax.f32 %v611, %v613
      %v619 = vmax.f32 %v615, %v617
      %v620 = vmax.f32 %v618, %v619
      %621 = vst.msk [vmem:[%s172] sm:$0xff] %vm578, %v620
      %s622 = scalar_lea.vmem [#allocation2], 32
      %v623 = vld [vmem:[%s622] ss:$2 sm:$0xff]
      %s624 = scalar_lea.vmem [#allocation2], 33
      %v625 = vld [vmem:[%s624] ss:$2 sm:$0xff]
      %s626 = scalar_lea.vmem [#allocation2], 48
      %v627 = vld [vmem:[%s626] ss:$2 sm:$0xff]
      %s628 = scalar_lea.vmem [#allocation2], 49
      %v629 = vld [vmem:[%s628] ss:$2 sm:$0xff]
      %v630 = vmax.f32 %v623, %v625
      %v631 = vmax.f32 %v627, %v629
      %v632 = vmax.f32 %v630, %v631
      %633 = vst.msk [vmem:[%s172 + $0x8] sm:$0xff] %vm578, %v632
      %s634 = scalar_lea.vmem [#allocation2], 64
      %v635 = vld [vmem:[%s634] ss:$2 sm:$0xff]
      %s636 = scalar_lea.vmem [#allocation2], 65
      %v637 = vld [vmem:[%s636] ss:$2 sm:$0xff]
      %s638 = scalar_lea.vmem [#allocation2], 80
      %v639 = vld [vmem:[%s638] ss:$2 sm:$0xff]
      %s640 = scalar_lea.vmem [#allocation2], 81
      %v641 = vld [vmem:[%s640] ss:$2 sm:$0xff]
      %v642 = vmax.f32 %v635, %v637
      %v643 = vmax.f32 %v639, %v641
      %v644 = vmax.f32 %v642, %v643
      %645 = vst.msk [vmem:[%s172 + $0x10] sm:$0xff] %vm578, %v644
      %s646 = scalar_lea.vmem [#allocation2], 96
      %v647 = vld [vmem:[%s646] ss:$2 sm:$0xff]
      %s648 = scalar_lea.vmem [#allocation2], 97
      %v649 = vld [vmem:[%s648] ss:$2 sm:$0xff]
      %s650 = scalar_lea.vmem [#allocation2], 112
      %v651 = vld [vmem:[%s650] ss:$2 sm:$0xff]
      %s652 = scalar_lea.vmem [#allocation2], 113
      %v653 = vld [vmem:[%s652] ss:$2 sm:$0xff]
      %v654 = vmax.f32 %v647, %v649
      %v655 = vmax.f32 %v651, %v653
      %v656 = vmax.f32 %v654, %v655
      %657 = vst.msk [vmem:[%s172 + $0x18] sm:$0xff] %vm578, %v656
      %s658 = scalar_lea.vmem [#allocation2], 128
      %v659 = vld [vmem:[%s658] ss:$2 sm:$0xff]
      %s660 = scalar_lea.vmem [#allocation2], 129
      %v661 = vld [vmem:[%s660] ss:$2 sm:$0xff]
      %s662 = scalar_lea.vmem [#allocation2], 144
      %v663 = vld [vmem:[%s662] ss:$2 sm:$0xff]
      %s664 = scalar_lea.vmem [#allocation2], 145
      %v665 = vld [vmem:[%s664] ss:$2 sm:$0xff]
      %v666 = vmax.f32 %v659, %v661
      %v667 = vmax.f32 %v663, %v665
      %v668 = vmax.f32 %v666, %v667
      %669 = vst.msk [vmem:[%s172 + $0x20] sm:$0xff] %vm578, %v668
      %s670 = scalar_lea.vmem [#allocation2], 160
      %v671 = vld [vmem:[%s670] ss:$2 sm:$0xff]
      %s672 = scalar_lea.vmem [#allocation2], 161
      %v673 = vld [vmem:[%s672] ss:$2 sm:$0xff]
      %s674 = scalar_lea.vmem [#allocation2], 176
      %v675 = vld [vmem:[%s674] ss:$2 sm:$0xff]
      %s676 = scalar_lea.vmem [#allocation2], 177
      %v677 = vld [vmem:[%s676] ss:$2 sm:$0xff]
      %v678 = vmax.f32 %v671, %v673
      %v679 = vmax.f32 %v675, %v677
      %v680 = vmax.f32 %v678, %v679
      %681 = vst.msk [vmem:[%s172 + $0x28] sm:$0xff] %vm578, %v680
      %s682 = scalar_lea.vmem [#allocation2], 192
      %v683 = vld [vmem:[%s682] ss:$2 sm:$0xff]
      %s684 = scalar_lea.vmem [#allocation2], 193
      %v685 = vld [vmem:[%s684] ss:$2 sm:$0xff]
      %s686 = scalar_lea.vmem [#allocation2], 208
      %v687 = vld [vmem:[%s686] ss:$2 sm:$0xff]
      %s688 = scalar_lea.vmem [#allocation2], 209
      %v689 = vld [vmem:[%s688] ss:$2 sm:$0xff]
      %v690 = vmax.f32 %v683, %v685
      %v691 = vmax.f32 %v687, %v689
      %v692 = vmax.f32 %v690, %v691
      %693 = vst.msk [vmem:[%s172 + $0x30] sm:$0xff] %vm578, %v692
      %s694 = scalar_lea.vmem [#allocation2], 224
      %v695 = vld [vmem:[%s694] ss:$2 sm:$0xff]
      %s696 = scalar_lea.vmem [#allocation2], 225
      %v697 = vld [vmem:[%s696] ss:$2 sm:$0xff]
      %s698 = scalar_lea.vmem [#allocation2], 240
      %v699 = vld [vmem:[%s698] ss:$2 sm:$0xff]
      %s700 = scalar_lea.vmem [#allocation2], 241
      %v701 = vld [vmem:[%s700] ss:$2 sm:$0xff]
      %v702 = vmax.f32 %v695, %v697
      %v703 = vmax.f32 %v699, %v701
      %v704 = vmax.f32 %v702, %v703
      %705 = vst.msk [vmem:[%s172 + $0x38] sm:$0xff] %vm578, %v704
      %s706 = smul.u32 8, %s14
      %p707 = scmp.lt.s32.totalorder %s706, 15
      %s708 = scalar_select %p707, %s706, 15
      %s709 = smul.addr %s708, 8
      %s710 = scalar_lea.vmem %s3, %s709
      // Predicated region
      $region33: #{tpu_custom_call.1} parent=31 // pred_check
        %p711 = pneg %p100
      $region34: #{tpu_custom_call.1} parent=31 // pred_check_branch
        %713 = sbr.rel (%p711) target = $region36
      $region35: #{tpu_custom_call.1} parent=31 // pred_region
        %s714 = smul.u32 8, %s14
      $region36: #{tpu_custom_call.1} parent=31 // pred_fallthru
        _
    $region32: #{tpu_custom_call.1} parent=5 // pred_fallthru
      _
    %p715 = scmp.le.s32.totalorder 2, %s9
    // Predicated region
    $region37: #{tpu_custom_call.1} parent=5 // pred_check
      %p716 = pneg %p715
    $region38: #{tpu_custom_call.1} parent=5 // pred_check_branch
      %718 = sbr.rel (%p716) target = $region40
    $region39: #{tpu_custom_call.1} parent=5 // pred_region
      %s719 = ssub.s32 %s9, 2
      // Predicated region
      $region41: #{tpu_custom_call.1} parent=39 // pred_check
        %p720 = pneg %p106
      $region42: #{tpu_custom_call.1} parent=39 // pred_check_branch
        %722 = sbr.rel (%p720) target = $region44
      $region43: #{tpu_custom_call.1} parent=39 // pred_region
        %s723 = smul.u32 8, %s15
        %p724 = scmp.lt.s32.totalorder %s723, 15
        %s725 = scalar_select %p724, %s723, 15
        %s726 = smul.addr %s725, 8
        %s727 = scalar_lea.vmem %s3, %s726
      $region44: #{tpu_custom_call.1} parent=39 // pred_fallthru
        _
    $region40: #{tpu_custom_call.1} parent=5 // pred_fallthru
      _
  $region6: #{tpu_custom_call.1} parent=0 // loop_footer
    %s13 = sadd.s32 1, %s9
  $region7: #{tpu_custom_call.1} parent=0 // loop_footer_branch
    %8 = sbr.rel target = $region3
  $region8: #{tpu_custom_call.1} parent=0 // loop_exit
    _

</llo_original>
